<compile_context>
chip_gen: v7x
topology: tpu7x:2x2x1
jax: 0.10.0
libtpu: 0.0.40
codegen_flags: <defaults>
</compile_context>

<pallas_src>
import math

import jax
import jax.numpy as jnp
from jax import lax
from jax.experimental import pallas as pl
from jax.experimental.pallas import tpu as pltpu


_LANE = 128
_SUBLANE = 8


def _round_up(x, m):
    return ((x + m - 1) // m) * m


def _round_down(x, m):
    return (x // m) * m


def _cdiv(a, b):
    return (a + b - 1) // b


# ----------------------------------------------------------------------------
# Kernel: per-channel patch matmul + bias + GELU -> 1x1 matmul + bias + sigmoid
# ----------------------------------------------------------------------------
def _patch_disc_kernel(x_ref, w1_ref, b1_ref, w2_ref, b2_ref, out_ref):
    # x_ref  : (Cin, TILE_P, ps)    f32   one batch element, TILE_P patches
    # w1_ref : (Cin, ps, E_pad)     bf16  resident, single-buffered
    # b1_ref : (1, E_pad)           f32   resident
    # w2_ref : (E_pad, P_out_pad)   bf16  resident
    # b2_ref : (1, P_out_pad)       f32   resident
    # out_ref: (TILE_P, P_out_pad)  f32   lane-dense (P_out_pad % 128 == 0)
    cin = x_ref.shape[0]

    # Conv1d(kernel=stride=ps): contract over (Cin, ps) as a static per-channel
    # loop of MXU dots with f32 accumulation.  This is the in-kernel patchify
    # (no wrapper-side HBM transpose pass over the input).
    # TODO(synk): for large Cin in an MXU-bound regime, a single fused
    # K=Cin*ps matmul (lane-concat of the channel slabs) would use fewer MXU
    # passes; the per-channel form is kept for robust Mosaic lowering.
    h = jnp.dot(x_ref[0].astype(jnp.bfloat16), w1_ref[0],
                preferred_element_type=jnp.float32)
    for c in range(1, cin):
        h = h + jnp.dot(x_ref[c].astype(jnp.bfloat16), w1_ref[c],
                        preferred_element_type=jnp.float32)
    h = h + b1_ref[...]

    # Exact (erf) GELU in f32 -- matches PyTorch nn.GELU() default.
    # TODO(synk): on v6e/v7x a bf16 / tanh-approx GELU would offload the VALU
    # polynomial to the bf16 VPU / EUP; kept exact-erf f32 for PyTorch parity.
    inv_sqrt2 = jnp.float32(0.7071067811865476)
    h = jnp.float32(0.5) * h * (jnp.float32(1.0) + lax.erf(h * inv_sqrt2))

    # 1x1 Conv1d == plain matmul over the channel dim (bf16 MXU, f32 accum).
    o = jnp.dot(h.astype(jnp.bfloat16), w2_ref[...],
                preferred_element_type=jnp.float32) + b2_ref[...]

    # Sigmoid: exp (EUP) + approximate reciprocal (EUP) -> ~free epilogue.
    out_ref[...] = pl.reciprocal(jnp.float32(1.0) + jnp.exp(-o), approx=True)


# ----------------------------------------------------------------------------
# Generation-aware VMEM budgets and tile sizing
# ----------------------------------------------------------------------------
def _vmem_budget_bytes():
    """(per-step working-set budget, vmem_limit_bytes) by TPU generation."""
    vmem_cap = None
    try:
        vmem_cap = getattr(pltpu.get_tpu_info(), "vmem_capacity_bytes", None)
    except Exception:
        vmem_cap = None
    if vmem_cap is not None and vmem_cap >= 96 * 1024 * 1024:
        # v5e / v6e: 128 MiB physical VMEM -> larger tiles, fewer grid steps.
        return 22 * 1024 * 1024, 64 * 1024 * 1024
    # v7x (64 MiB physical) or unknown chip: conservative sizing.
    return 12 * 1024 * 1024, 32 * 1024 * 1024


def _choose_tile_p(P, B, Cin, ps, E_pad, P_out_pad, budget_bytes):
    """Largest MXU/layout-friendly patch tile that fits the VMEM budget."""
    if P <= _SUBLANE:
        return P

    # Resident weights/biases (single-buffered via pl.Buffered(1)).
    resident = (Cin * _round_up(ps, _SUBLANE) * E_pad * 2   # w1 bf16
                + E_pad * 4                                  # b1 f32
                + E_pad * P_out_pad * 2                      # w2 bf16
                + P_out_pad * 4)                             # b2 f32
    # Per patch-row bytes (lane padding of the narrow ps axis included).
    per_row = (Cin * _round_up(ps, _LANE) * 4 * 2   # x block f32, double-buffered
               + Cin * _round_up(ps, _LANE) * 2     # bf16 cast of a channel slab
               + E_pad * (4 + 2)                    # f32 H + bf16 copy for matmul 2
               + P_out_pad * 4                      # f32 o before the store
               + P_out_pad * 4 * 2)                 # f32 output block, double-buffered
    avail = max(budget_bytes - resident, per_row * _SUBLANE)
    tile = avail // per_row

    # MXU/layout-friendly rounding (256 keeps v6e/v7x MXU passes unragged,
    # 128 for v5e-sized tiles, 8 is the f32 sublane minimum).
    if tile >= 512:
        tile = _round_down(tile, 256)
    elif tile >= 128:
        tile = _round_down(tile, 128)
    else:
        tile = max(_round_down(tile, _SUBLANE), _SUBLANE)
    if tile > P:
        tile = P

    # Keep >= 4 total grid steps (2 per TensorCore on v7x megacore) when P allows.
    while B * _cdiv(P, tile) < 4 and tile >= 2 * _SUBLANE:
        tile = max(_round_down(_cdiv(tile, 2), _SUBLANE), _SUBLANE)
    if tile < P and tile % _SUBLANE != 0:
        tile = max(_round_down(tile, _SUBLANE), _SUBLANE)
    return tile


# ----------------------------------------------------------------------------
# Wrapper
# ----------------------------------------------------------------------------
def patch_discriminator_1d(x, params, patch_size):
    """Forward pass matching PatchDiscriminator1D.forward.

    x: (B, C_in, L) float32 (PyTorch NCL layout)
    returns: (B, sequence_length // patch_size, L // patch_size) float32
    """
    B, Cin, L = x.shape
    P = L // patch_size                          # conv1 output length
    E = params["w1"].shape[0]                    # embed dimension
    P_out = params["w2"].shape[0]                # sequence_length // patch_size
    E_pad = _round_up(E, _LANE)
    P_out_pad = _round_up(P_out, _LANE)

    if L != P * patch_size:                      # Conv1d(stride=ps) drops the tail
        x = x[:, :, :P * patch_size]
    # Free reshape (only splits the minor axis): no HBM transpose pass.
    x4 = x.reshape(B, Cin, P, patch_size)

    budget, vmem_limit = _vmem_budget_bytes()
    tile_p = _choose_tile_p(P, B, Cin, patch_size, E_pad, P_out_pad, budget)
    grid = (B, _cdiv(P, tile_p))

    # Weight prep (tiny, weight-side): w1 -> (Cin, ps, E_pad) so the kernel's
    # per-channel dots reproduce the Conv1d channel-major contraction exactly.
    # Zero padding of E/P_out is exact: GELU(0) = 0 on padded hidden columns
    # and the matching w2 rows are zero, so padded lanes never affect outputs.
    w1 = jnp.transpose(params["w1"], (1, 2, 0))                       # (Cin, ps, E)
    w1 = jnp.pad(w1, ((0, 0), (0, 0), (0, E_pad - E))).astype(jnp.bfloat16)
    b1 = jnp.pad(params["b1"], (0, E_pad - E)).reshape(1, E_pad).astype(jnp.float32)
    w2 = jnp.pad(params["w2"].T, ((0, E_pad - E), (0, P_out_pad - P_out)))
    w2 = w2.astype(jnp.bfloat16)                                      # (E_pad, P_out_pad)
    b2 = jnp.pad(params["b2"], (0, P_out_pad - P_out)).reshape(1, P_out_pad)
    b2 = b2.astype(jnp.float32)

    # Advisory cost estimate for XLA's scheduler.
    flops = 2 * B * P * (Cin * patch_size) * E_pad + 2 * B * P * E_pad * P_out_pad
    transcendentals = B * P * (E_pad + 2 * P_out_pad)     # erf + exp + recip
    bytes_accessed = (x4.size * 4 + w1.size * 2 + w2.size * 2
                      + b1.size * 4 + b2.size * 4 + B * P * P_out_pad * 4)
    cost = pl.CostEstimate(flops=flops, transcendentals=transcendentals,
                           bytes_accessed=bytes_accessed)

    resident = pl.Buffered(1)    # constant index_map -> no double buffer needed

    kernel = pl.pallas_call(
        _patch_disc_kernel,
        out_shape=jax.ShapeDtypeStruct((B, P, P_out_pad), jnp.float32),
        grid=grid,
        in_specs=[
            # TODO(synk): sweep pl.Buffered(3) here if profiling shows exposed DMA.
            pl.BlockSpec((None, Cin, tile_p, patch_size),
                         lambda b, p: (b, 0, p, 0)),
            pl.BlockSpec((Cin, patch_size, E_pad), lambda b, p: (0, 0, 0),
                         pipeline_mode=resident),
            pl.BlockSpec((1, E_pad), lambda b, p: (0, 0),
                         pipeline_mode=resident),
            pl.BlockSpec((E_pad, P_out_pad), lambda b, p: (0, 0),
                         pipeline_mode=resident),
            pl.BlockSpec((1, P_out_pad), lambda b, p: (0, 0),
                         pipeline_mode=resident),
        ],
        out_specs=pl.BlockSpec((None, tile_p, P_out_pad), lambda b, p: (b, p, 0)),
        compiler_params=pltpu.CompilerParams(
            dimension_semantics=("parallel", "parallel"),   # megacore sharding
            vmem_limit_bytes=vmem_limit,
        ),
        cost_estimate=cost,
    )
    out = kernel(x4, w1, b1, w2, b2)             # (B, P, P_out_pad) f32

    # TODO(synk): downstream could consume (B, P, P_out) directly and skip this
    # small transpose back to the Conv1d (B, P_out, P) output layout.
    return out[:, :, :P_out].transpose(0, 2, 1)


# ----------------------------------------------------------------------------
# Pure-JAX reference (mirrors the PyTorch module op-for-op, f32 everywhere)
# ----------------------------------------------------------------------------
def _reference_forward(x, params, patch_size):
    w1 = params["w1"]                                # (E, Cin, ps)
    b1 = params["b1"]                                # (E,)
    w2 = params["w2"]                                # (P_out, E)
    b2 = params["b2"]                                # (P_out,)

    h = lax.conv_general_dilated(
        x, w1, window_strides=(patch_size,), padding="VALID",
        dimension_numbers=("NCH", "OIH", "NCH"))
    h = h + b1[None, :, None]
    h = 0.5 * h * (1.0 + lax.erf(h / jnp.sqrt(2.0)))             # exact GELU
    o = jnp.einsum("oe,bel->bol", w2, h) + b2[None, :, None]     # 1x1 conv
    return jax.nn.sigmoid(o)


# ----------------------------------------------------------------------------
# Deterministic parameter init (PyTorch Conv1d default-style uniform)
# ----------------------------------------------------------------------------
def _init_params(key, sequence_length, in_channels, embed_dimension, patch_size):
    k1, k2, k3, k4 = jax.random.split(key, 4)
    p_out = sequence_length // patch_size

    fan_in1 = in_channels * patch_size
    bound1 = 1.0 / math.sqrt(fan_in1)
    w1 = jax.random.uniform(k1, (embed_dimension, in_channels, patch_size),
                            jnp.float32, -bound1, bound1)
    b1 = jax.random.uniform(k2, (embed_dimension,), jnp.float32, -bound1, bound1)

    fan_in2 = embed_dimension * 1
    bound2 = 1.0 / math.sqrt(fan_in2)
    w2 = jax.random.uniform(k3, (p_out, embed_dimension), jnp.float32, -bound2, bound2)
    b2 = jax.random.uniform(k4, (p_out,), jnp.float32, -bound2, bound2)

    return {"w1": w1, "b1": b1, "w2": w2, "b2": b2}


if __name__ == "__main__":
    # Small shapes consistent with the module's constructor.
    batch = 2
    in_channels = 4
    sequence_length = 32
    patch_size = 8
    embed_dimension = 32

    key = jax.random.PRNGKey(0)
    kx, kp = jax.random.split(key)

    x = jax.random.normal(kx, (batch, in_channels, sequence_length), jnp.float32)
    params = _init_params(kp, sequence_length, in_channels, embed_dimension, patch_size)

    fwd = jax.jit(patch_discriminator_1d, static_argnames=("patch_size",))
    out = fwd(x, params, patch_size=patch_size)
    out = jax.block_until_ready(out)

    ref = _reference_forward(x, params, patch_size)
    assert out.shape == ref.shape == (batch,
                                      sequence_length // patch_size,
                                      sequence_length // patch_size)
    # bf16 MXU inputs + approximate reciprocal in the sigmoid -> loose tolerance.
    assert jnp.allclose(out, ref, atol=2e-2, rtol=2e-2), (
        float(jnp.max(jnp.abs(out - ref))))

    print("KERNEL_OK")
</pallas_src>

<mosaic_0001>
module attributes {stable_mosaic.version = 11 : i64} {
  func.func @_patch_disc_kernel(%arg0: i32, %arg1: i32, %arg2: memref<1x4x4x8xf32, #tpu.memory_space<vmem>>, %arg3: memref<4x8x128xbf16, #tpu.memory_space<vmem>>, %arg4: memref<1x128xf32, #tpu.memory_space<vmem>>, %arg5: memref<128x128xbf16, #tpu.memory_space<vmem>>, %arg6: memref<1x128xf32, #tpu.memory_space<vmem>>, %arg7: memref<1x4x128xf32, #tpu.memory_space<vmem>>) attributes {dimension_semantics = [#tpu.dimension_semantics<parallel>, #tpu.dimension_semantics<parallel>], iteration_bounds = array<i64: 2, 1>, scalar_prefetch = 0 : i64, scratch_operands = 0 : i64, tpu.core_type = #tpu.core_type<tc>, window_params = [{transform_indices = @transform_0, window_bounds = array<i64: 1, 4, 4, 8>}, {pipeline_mode = #tpu.pipeline_mode<synchronous>, transform_indices = @transform_1, window_bounds = array<i64: 4, 8, 128>}, {pipeline_mode = #tpu.pipeline_mode<synchronous>, transform_indices = @transform_2, window_bounds = array<i64: 1, 128>}, {pipeline_mode = #tpu.pipeline_mode<synchronous>, transform_indices = @transform_3, window_bounds = array<i64: 128, 128>}, {pipeline_mode = #tpu.pipeline_mode<synchronous>, transform_indices = @transform_4, window_bounds = array<i64: 1, 128>}, {transform_indices = @transform_5, window_bounds = array<i64: 1, 4, 128>}]} {
    %c0 = arith.constant 0 : index
    %c0_0 = arith.constant 0 : index
    %c0_1 = arith.constant 0 : index
    %c0_2 = arith.constant 0 : index
    %0 = vector.load %arg2[%c0, %c0_0, %c0_1, %c0_2] : memref<1x4x4x8xf32, #tpu.memory_space<vmem>>, vector<1x1x4x8xf32>
    %1 = vector.shape_cast %0 : vector<1x1x4x8xf32> to vector<4x8xf32>
    %2 = arith.truncf %1 : vector<4x8xf32> to vector<4x8xbf16>
    %c0_3 = arith.constant 0 : index
    %c0_4 = arith.constant 0 : index
    %c0_5 = arith.constant 0 : index
    %3 = vector.load %arg3[%c0_3, %c0_4, %c0_5] : memref<4x8x128xbf16, #tpu.memory_space<vmem>>, vector<1x8x128xbf16>
    %4 = vector.shape_cast %3 : vector<1x8x128xbf16> to vector<8x128xbf16>
    %cst = arith.constant dense<0.000000e+00> : vector<4x128xf32>
    %5 = tpu.matmul %2, %4, %cst {dimension_numbers = #tpu.dot_dimension_numbers<[1], [0], [0], [1], [0, 0, 1, 1], [], []>} : vector<4x8xbf16>, vector<8x128xbf16>, vector<4x128xf32> -> vector<4x128xf32>
    %c0_6 = arith.constant 0 : index
    %c1 = arith.constant 1 : index
    %c0_7 = arith.constant 0 : index
    %c0_8 = arith.constant 0 : index
    %6 = vector.load %arg2[%c0_6, %c1, %c0_7, %c0_8] : memref<1x4x4x8xf32, #tpu.memory_space<vmem>>, vector<1x1x4x8xf32>
    %7 = vector.shape_cast %6 : vector<1x1x4x8xf32> to vector<4x8xf32>
    %8 = arith.truncf %7 : vector<4x8xf32> to vector<4x8xbf16>
    %c1_9 = arith.constant 1 : index
    %c0_10 = arith.constant 0 : index
    %c0_11 = arith.constant 0 : index
    %9 = vector.load %arg3[%c1_9, %c0_10, %c0_11] : memref<4x8x128xbf16, #tpu.memory_space<vmem>>, vector<1x8x128xbf16>
    %10 = vector.shape_cast %9 : vector<1x8x128xbf16> to vector<8x128xbf16>
    %cst_12 = arith.constant dense<0.000000e+00> : vector<4x128xf32>
    %11 = tpu.matmul %8, %10, %cst_12 {dimension_numbers = #tpu.dot_dimension_numbers<[1], [0], [0], [1], [0, 0, 1, 1], [], []>} : vector<4x8xbf16>, vector<8x128xbf16>, vector<4x128xf32> -> vector<4x128xf32>
    %12 = arith.addf %5, %11 : vector<4x128xf32>
    %c0_13 = arith.constant 0 : index
    %c2 = arith.constant 2 : index
    %c0_14 = arith.constant 0 : index
    %c0_15 = arith.constant 0 : index
    %13 = vector.load %arg2[%c0_13, %c2, %c0_14, %c0_15] : memref<1x4x4x8xf32, #tpu.memory_space<vmem>>, vector<1x1x4x8xf32>
    %14 = vector.shape_cast %13 : vector<1x1x4x8xf32> to vector<4x8xf32>
    %15 = arith.truncf %14 : vector<4x8xf32> to vector<4x8xbf16>
    %c2_16 = arith.constant 2 : index
    %c0_17 = arith.constant 0 : index
    %c0_18 = arith.constant 0 : index
    %16 = vector.load %arg3[%c2_16, %c0_17, %c0_18] : memref<4x8x128xbf16, #tpu.memory_space<vmem>>, vector<1x8x128xbf16>
    %17 = vector.shape_cast %16 : vector<1x8x128xbf16> to vector<8x128xbf16>
    %cst_19 = arith.constant dense<0.000000e+00> : vector<4x128xf32>
    %18 = tpu.matmul %15, %17, %cst_19 {dimension_numbers = #tpu.dot_dimension_numbers<[1], [0], [0], [1], [0, 0, 1, 1], [], []>} : vector<4x8xbf16>, vector<8x128xbf16>, vector<4x128xf32> -> vector<4x128xf32>
    %19 = arith.addf %12, %18 : vector<4x128xf32>
    %c0_20 = arith.constant 0 : index
    %c3 = arith.constant 3 : index
    %c0_21 = arith.constant 0 : index
    %c0_22 = arith.constant 0 : index
    %20 = vector.load %arg2[%c0_20, %c3, %c0_21, %c0_22] : memref<1x4x4x8xf32, #tpu.memory_space<vmem>>, vector<1x1x4x8xf32>
    %21 = vector.shape_cast %20 : vector<1x1x4x8xf32> to vector<4x8xf32>
    %22 = arith.truncf %21 : vector<4x8xf32> to vector<4x8xbf16>
    %c3_23 = arith.constant 3 : index
    %c0_24 = arith.constant 0 : index
    %c0_25 = arith.constant 0 : index
    %23 = vector.load %arg3[%c3_23, %c0_24, %c0_25] : memref<4x8x128xbf16, #tpu.memory_space<vmem>>, vector<1x8x128xbf16>
    %24 = vector.shape_cast %23 : vector<1x8x128xbf16> to vector<8x128xbf16>
    %cst_26 = arith.constant dense<0.000000e+00> : vector<4x128xf32>
    %25 = tpu.matmul %22, %24, %cst_26 {dimension_numbers = #tpu.dot_dimension_numbers<[1], [0], [0], [1], [0, 0, 1, 1], [], []>} : vector<4x8xbf16>, vector<8x128xbf16>, vector<4x128xf32> -> vector<4x128xf32>
    %26 = arith.addf %19, %25 : vector<4x128xf32>
    %c0_27 = arith.constant 0 : index
    %c0_28 = arith.constant 0 : index
    %27 = vector.load %arg4[%c0_27, %c0_28] : memref<1x128xf32, #tpu.memory_space<vmem>>, vector<1x128xf32>
    %28 = vector.broadcast %27 : vector<1x128xf32> to vector<4x128xf32>
    %29 = arith.addf %26, %28 : vector<4x128xf32>
    %cst_29 = arith.constant 5.000000e-01 : f32
    %30 = vector.broadcast %cst_29 : f32 to vector<4x128xf32>
    %31 = arith.mulf %30, %29 : vector<4x128xf32>
    %cst_30 = arith.constant 0.707106769 : f32
    %32 = vector.broadcast %cst_30 : f32 to vector<4x128xf32>
    %33 = arith.mulf %29, %32 : vector<4x128xf32>
    %34 = math.erf %33 : vector<4x128xf32>
    %cst_31 = arith.constant 1.000000e+00 : f32
    %35 = vector.broadcast %cst_31 : f32 to vector<4x128xf32>
    %36 = arith.addf %35, %34 : vector<4x128xf32>
    %37 = arith.mulf %31, %36 : vector<4x128xf32>
    %38 = arith.truncf %37 : vector<4x128xf32> to vector<4x128xbf16>
    %c0_32 = arith.constant 0 : index
    %c0_33 = arith.constant 0 : index
    %39 = vector.load %arg5[%c0_32, %c0_33] : memref<128x128xbf16, #tpu.memory_space<vmem>>, vector<128x128xbf16>
    %cst_34 = arith.constant dense<0.000000e+00> : vector<4x128xf32>
    %40 = tpu.matmul %38, %39, %cst_34 {dimension_numbers = #tpu.dot_dimension_numbers<[1], [0], [0], [1], [0, 0, 1, 1], [], []>} : vector<4x128xbf16>, vector<128x128xbf16>, vector<4x128xf32> -> vector<4x128xf32>
    %c0_35 = arith.constant 0 : index
    %c0_36 = arith.constant 0 : index
    %41 = vector.load %arg6[%c0_35, %c0_36] : memref<1x128xf32, #tpu.memory_space<vmem>>, vector<1x128xf32>
    %42 = vector.broadcast %41 : vector<1x128xf32> to vector<4x128xf32>
    %43 = arith.addf %40, %42 : vector<4x128xf32>
    %cst_37 = arith.constant 0.000000e+00 : f32
    %44 = vector.broadcast %cst_37 : f32 to vector<4x128xf32>
    %45 = arith.subf %44, %43 : vector<4x128xf32>
    %46 = math.exp %45 : vector<4x128xf32>
    %cst_38 = arith.constant 1.000000e+00 : f32
    %47 = vector.broadcast %cst_38 : f32 to vector<4x128xf32>
    %48 = arith.addf %47, %46 : vector<4x128xf32>
    %49 = tpu.reciprocal %48 {approx = true} : vector<4x128xf32> -> vector<4x128xf32>
    %c0_39 = arith.constant 0 : index
    %c0_40 = arith.constant 0 : index
    %c0_41 = arith.constant 0 : index
    %50 = vector.load %arg7[%c0_39, %c0_40, %c0_41] : memref<1x4x128xf32, #tpu.memory_space<vmem>>, vector<1x4x128xf32>
    %51 = vector.shape_cast %50 : vector<1x4x128xf32> to vector<4x128xf32>
    %52 = vector.shape_cast %49 : vector<4x128xf32> to vector<1x4x128xf32>
    tpu.vector_store %arg7[%c0_39, %c0_40, %c0_41], %52 {strides = array<i32>} : memref<1x4x128xf32, #tpu.memory_space<vmem>>, vector<1x4x128xf32>,
    return
  }
  func.func @transform_0(%arg0: i32, %arg1: i32) -> (i32, i32, i32, i32) {
    %c0_i32 = arith.constant 0 : i32
    %c0_i32_0 = arith.constant 0 : i32
    %c0_i32_1 = arith.constant 0 : i32
    return %arg0, %c0_i32, %arg1, %c0_i32_0 : i32, i32, i32, i32
  }
  func.func @transform_1(%arg0: i32, %arg1: i32) -> (i32, i32, i32) {
    %c0_i32 = arith.constant 0 : i32
    %c0_i32_0 = arith.constant 0 : i32
    %c0_i32_1 = arith.constant 0 : i32
    %c0_i32_2 = arith.constant 0 : i32
    return %c0_i32, %c0_i32_0, %c0_i32_1 : i32, i32, i32
  }
  func.func @transform_2(%arg0: i32, %arg1: i32) -> (i32, i32) {
    %c0_i32 = arith.constant 0 : i32
    %c0_i32_0 = arith.constant 0 : i32
    %c0_i32_1 = arith.constant 0 : i32
    return %c0_i32, %c0_i32_0 : i32, i32
  }
  func.func @transform_3(%arg0: i32, %arg1: i32) -> (i32, i32) {
    %c0_i32 = arith.constant 0 : i32
    %c0_i32_0 = arith.constant 0 : i32
    %c0_i32_1 = arith.constant 0 : i32
    return %c0_i32, %c0_i32_0 : i32, i32
  }
  func.func @transform_4(%arg0: i32, %arg1: i32) -> (i32, i32) {
    %c0_i32 = arith.constant 0 : i32
    %c0_i32_0 = arith.constant 0 : i32
    %c0_i32_1 = arith.constant 0 : i32
    return %c0_i32, %c0_i32_0 : i32, i32
  }
  func.func @transform_5(%arg0: i32, %arg1: i32) -> (i32, i32, i32) {
    %c0_i32 = arith.constant 0 : i32
    %c0_i32_0 = arith.constant 0 : i32
    return %arg0, %arg1, %c0_i32 : i32, i32, i32
  }
}

</mosaic_0001>

<llo_original>
// kernel: patch_discriminator_1d.1
$region0: #{patch_discriminator_1d.1}
  #allocation0 [shape = 'u32[]', space=smem, size = 0x4, offset = 0x4, fixed_abs, tag = 'smem constant byte address 0x4 - core index']
  #allocation1 [shape = 'u32[144,128]{1,0:T(1,128)}', space=vmem, size = 0x12000, scoped, tag = 'internal scratch']
  %s0 = inlined_call_operand.vmem [shape: f32[2,4,4,8], index: 0, kind: input, shape index: {}]
  %s1 = inlined_call_operand.vmem [shape: bf16[4,8,128], index: 1, kind: input, shape index: {}]
  %s2 = inlined_call_operand.vmem [shape: f32[1,128], index: 2, kind: input, shape index: {}]
  %s3 = inlined_call_operand.vmem [shape: bf16[128,128], index: 3, kind: input, shape index: {}]
  %s4 = inlined_call_operand.vmem [shape: f32[1,128], index: 4, kind: input, shape index: {}]
  %s5 = inlined_call_operand.vmem [shape: f32[2,4,128], index: 5, kind: output, shape index: {}]
  %s6 = sld [smem:[#allocation0]]
  $region53: #{patch_discriminator_1d.1} parent=0
    _
  %s8 = ssub.s32 1, %s6
  %s9 = scalar_select 0, %s8, %s6
  loop: start=0, step=1, limit=4
  $region2: #{patch_discriminator_1d.1} parent=0 // loop_pre_header
    _
  $region3: #{patch_discriminator_1d.1} parent=0 // loop_header
    %s11 = sphi 0, %s15
    %p12 = scmp.ge.s32.totalorder %s11, 4
    %s18 = sphi 0, %s30
    %s19 = sphi 0, %s26
    %s20 = sphi 0, %s18
    %s21 = sphi 0, %s19
    %s22 = sphi 0, %s20
    %s23 = sphi 0, %s21
    %s35 = sphi 0, %s37
    %s38 = sphi 0, %s35
    %s39 = sphi 0, %s38
    %s55 = sphi 0, %s39
    %s59 = sphi 0, %s59
    %s61 = sphi 0, %s59
    %s62 = sphi 0, %s61
    %s76 = sphi 0, %s62
    %s80 = sphi 0, %s80
    %s82 = sphi 0, %s80
    %s83 = sphi 0, %s82
    %s97 = sphi 0, %s83
    %s101 = sphi 0, %s101
    %s103 = sphi 0, %s101
    %s104 = sphi 0, %s103
    %s118 = sphi 0, %s104
    %s122 = sphi 0, %s122
    %s124 = sphi 0, %s122
    %s125 = sphi 0, %s124
    %s139 = sphi 0, %s125
    %s147 = sphi 0, %s149
    %s150 = sphi 0, %s147
    %s151 = sphi 0, %s150
    %s167 = sphi 0, %s151
  $region4: #{patch_discriminator_1d.1} parent=0 // loop_header_branch
    %14 = sbr.rel (%p12) target = $region8
  $region5: #{patch_discriminator_1d.1} parent=0 // loop_body
    %s16 = ssub.s32 %s11, 1
    %s17 = ssub.s32 %s11, 2
    %s24 = sadd.s32 1, %s19
    %p25 = scmp.ge.s32.totalorder %s24, 1
    %s26 = scalar_select %p25, 0, %s24
    %s27 = sadd.s32 1, %s18
    %s28 = scalar_select %p25, %s27, %s18
    %p29 = scmp.ge.s32.totalorder %s28, 2
    %s30 = scalar_select %p29, 0, %s28
    %s31 = ssub.s32 %s18, %s30
    %s32 = ssub.s32 %s19, %s26
    %s33 = sor.u32 %s31, %s32
    %p34 = scmp.eq.s32.totalorder %s33, 0
    %s36 = sadd.s32 %s35, 1
    %s37 = scalar_select %p34, %s35, %s36
    %p40 = pneg %p34
    %p41 = scmp.eq.s32.totalorder %s11, 1
    %p42 = por %p40, %p41
    %p43 = scmp.ne.s32.totalorder %s35, %s38
    %p44 = scmp.eq.s32.totalorder %s11, 0
    %p45 = por %p43, %p44
    %p46 = scmp.ne.s32.totalorder %s35, %s38
    %p47 = scmp.eq.s32.totalorder %s16, 1
    %p48 = por %p46, %p47
    %p49 = scmp.ne.s32.totalorder %s38, %s39
    %p50 = scmp.eq.s32.totalorder %s16, 0
    %p51 = por %p49, %p50
    %p52 = scmp.ne.s32.totalorder %s38, %s39
    %p53 = scmp.eq.s32.totalorder %s17, 1
    %p54 = por %p52, %p53
    %p56 = scmp.ne.s32.totalorder %s39, %s55
    %p57 = scmp.eq.s32.totalorder %s17, 0
    %p58 = por %p56, %p57
    %s60 = sadd.s32 %s59, 1
    %p63 = scmp.eq.s32.totalorder %s11, 1
    %p64 = scmp.ne.s32.totalorder %s59, %s61
    %p65 = scmp.eq.s32.totalorder %s11, 0
    %p66 = por %p64, %p65
    %p67 = scmp.ne.s32.totalorder %s59, %s61
    %p68 = scmp.eq.s32.totalorder %s16, 1
    %p69 = por %p67, %p68
    %p70 = scmp.ne.s32.totalorder %s61, %s62
    %p71 = scmp.eq.s32.totalorder %s16, 0
    %p72 = por %p70, %p71
    %p73 = scmp.ne.s32.totalorder %s61, %s62
    %p74 = scmp.eq.s32.totalorder %s17, 1
    %p75 = por %p73, %p74
    %p77 = scmp.ne.s32.totalorder %s62, %s76
    %p78 = scmp.eq.s32.totalorder %s17, 0
    %p79 = por %p77, %p78
    %s81 = sadd.s32 %s80, 1
    %p84 = scmp.eq.s32.totalorder %s11, 1
    %p85 = scmp.ne.s32.totalorder %s80, %s82
    %p86 = scmp.eq.s32.totalorder %s11, 0
    %p87 = por %p85, %p86
    %p88 = scmp.ne.s32.totalorder %s80, %s82
    %p89 = scmp.eq.s32.totalorder %s16, 1
    %p90 = por %p88, %p89
    %p91 = scmp.ne.s32.totalorder %s82, %s83
    %p92 = scmp.eq.s32.totalorder %s16, 0
    %p93 = por %p91, %p92
    %p94 = scmp.ne.s32.totalorder %s82, %s83
    %p95 = scmp.eq.s32.totalorder %s17, 1
    %p96 = por %p94, %p95
    %p98 = scmp.ne.s32.totalorder %s83, %s97
    %p99 = scmp.eq.s32.totalorder %s17, 0
    %p100 = por %p98, %p99
    %s102 = sadd.s32 %s101, 1
    %p105 = scmp.eq.s32.totalorder %s11, 1
    %p106 = scmp.ne.s32.totalorder %s101, %s103
    %p107 = scmp.eq.s32.totalorder %s11, 0
    %p108 = por %p106, %p107
    %p109 = scmp.ne.s32.totalorder %s101, %s103
    %p110 = scmp.eq.s32.totalorder %s16, 1
    %p111 = por %p109, %p110
    %p112 = scmp.ne.s32.totalorder %s103, %s104
    %p113 = scmp.eq.s32.totalorder %s16, 0
    %p114 = por %p112, %p113
    %p115 = scmp.ne.s32.totalorder %s103, %s104
    %p116 = scmp.eq.s32.totalorder %s17, 1
    %p117 = por %p115, %p116
    %p119 = scmp.ne.s32.totalorder %s104, %s118
    %p120 = scmp.eq.s32.totalorder %s17, 0
    %p121 = por %p119, %p120
    %s123 = sadd.s32 %s122, 1
    %p126 = scmp.eq.s32.totalorder %s11, 1
    %p127 = scmp.ne.s32.totalorder %s122, %s124
    %p128 = scmp.eq.s32.totalorder %s11, 0
    %p129 = por %p127, %p128
    %p130 = scmp.ne.s32.totalorder %s122, %s124
    %p131 = scmp.eq.s32.totalorder %s16, 1
    %p132 = por %p130, %p131
    %p133 = scmp.ne.s32.totalorder %s124, %s125
    %p134 = scmp.eq.s32.totalorder %s16, 0
    %p135 = por %p133, %p134
    %p136 = scmp.ne.s32.totalorder %s124, %s125
    %p137 = scmp.eq.s32.totalorder %s17, 1
    %p138 = por %p136, %p137
    %p140 = scmp.ne.s32.totalorder %s125, %s139
    %p141 = scmp.eq.s32.totalorder %s17, 0
    %p142 = por %p140, %p141
    %s143 = ssub.s32 %s18, %s30
    %s144 = ssub.s32 %s19, %s26
    %s145 = sor.u32 %s143, %s144
    %p146 = scmp.eq.s32.totalorder %s145, 0
    %s148 = sadd.s32 %s147, 1
    %s149 = scalar_select %p146, %s147, %s148
    %p152 = pneg %p146
    %p153 = scmp.eq.s32.totalorder %s11, 1
    %p154 = por %p152, %p153
    %p155 = scmp.ne.s32.totalorder %s147, %s150
    %p156 = scmp.eq.s32.totalorder %s11, 0
    %p157 = por %p155, %p156
    %p158 = scmp.ne.s32.totalorder %s147, %s150
    %p159 = scmp.eq.s32.totalorder %s16, 1
    %p160 = por %p158, %p159
    %p161 = scmp.ne.s32.totalorder %s150, %s151
    %p162 = scmp.eq.s32.totalorder %s16, 0
    %p163 = por %p161, %p162
    %p164 = scmp.ne.s32.totalorder %s150, %s151
    %p165 = scmp.eq.s32.totalorder %s17, 1
    %p166 = por %p164, %p165
    %p168 = scmp.ne.s32.totalorder %s151, %s167
    %p169 = scmp.eq.s32.totalorder %s17, 0
    %p170 = por %p168, %p169
    %p171 = scmp.le.s32.totalorder 1, %s11
    %p172 = scmp.lt.s32.totalorder %s11, 3
    %p173 = pnand %p171, %p172
    %p174 = pneg %p173
    // Predicated region
    $region9: #{patch_discriminator_1d.1} parent=5 // pred_check
      _
    $region10: #{patch_discriminator_1d.1} parent=5 // pred_check_branch
      %176 = sbr.rel (%p173) target = $region12
    $region11: #{patch_discriminator_1d.1} parent=5 // pred_region
      %s177 = ssub.s32 %s11, 1
      // Predicated region
      $region13: #{patch_discriminator_1d.1} parent=11 // pred_check
        %p178 = pneg %p72
      $region14: #{patch_discriminator_1d.1} parent=11 // pred_check_branch
        %180 = sbr.rel (%p178) target = $region16
      $region15: #{patch_discriminator_1d.1} parent=11 // pred_region
        _
      $region16: #{patch_discriminator_1d.1} parent=11 // pred_fallthru
        _
      // Predicated region
      $region17: #{patch_discriminator_1d.1} parent=11 // pred_check
        %p181 = pneg %p93
      $region18: #{patch_discriminator_1d.1} parent=11 // pred_check_branch
        %183 = sbr.rel (%p181) target = $region20
      $region19: #{patch_discriminator_1d.1} parent=11 // pred_region
        _
      $region20: #{patch_discriminator_1d.1} parent=11 // pred_fallthru
        _
      // Predicated region
      $region21: #{patch_discriminator_1d.1} parent=11 // pred_check
        %p184 = pneg %p114
      $region22: #{patch_discriminator_1d.1} parent=11 // pred_check_branch
        %186 = sbr.rel (%p184) target = $region24
      $region23: #{patch_discriminator_1d.1} parent=11 // pred_region
        _
      $region24: #{patch_discriminator_1d.1} parent=11 // pred_fallthru
        _
      // Predicated region
      $region25: #{patch_discriminator_1d.1} parent=11 // pred_check
        %p187 = pneg %p135
      $region26: #{patch_discriminator_1d.1} parent=11 // pred_check_branch
        %189 = sbr.rel (%p187) target = $region28
      $region27: #{patch_discriminator_1d.1} parent=11 // pred_region
        _
      $region28: #{patch_discriminator_1d.1} parent=11 // pred_fallthru
        _
    $region12: #{patch_discriminator_1d.1} parent=5 // pred_fallthru
      _
    %p190 = scmp.lt.s32.totalorder %s11, 2
    // Predicated region
    $region29: #{patch_discriminator_1d.1} parent=5 // pred_check
      %p191 = pneg %p190
    $region30: #{patch_discriminator_1d.1} parent=5 // pred_check_branch
      %193 = sbr.rel (%p191) target = $region32
    $region31: #{patch_discriminator_1d.1} parent=5 // pred_region
      // Predicated region
      $region33: #{patch_discriminator_1d.1} parent=31 // pred_check
        %p194 = pneg %p45
      $region34: #{patch_discriminator_1d.1} parent=31 // pred_check_branch
        %196 = sbr.rel (%p194) target = $region36
      $region35: #{patch_discriminator_1d.1} parent=31 // pred_region
        %p197 = scmp.lt.s32.totalorder %s18, 1
        %s198 = scalar_select %p197, %s18, 1
        %p199 = scmp.lt.s32.totalorder %s19, 0
        %s200 = scalar_select %p199, %s19, 0
        %s201 = smul.addr %s198, 4
        %s202 = sadd.s32 %s200, %s201
        %s203 = smul.addr %s202, 4
        %s204 = scalar_lea.vmem %s0, %s203
      $region36: #{patch_discriminator_1d.1} parent=31 // pred_fallthru
        _
    $region32: #{patch_discriminator_1d.1} parent=5 // pred_fallthru
      _
    %p205 = scmp.le.s32.totalorder 1, %s11
    %p206 = scmp.lt.s32.totalorder %s11, 3
    %p207 = pnand %p205, %p206
    %p208 = pneg %p207
    // Predicated region
    $region37: #{patch_discriminator_1d.1} parent=5 // pred_check
      _
    $region38: #{patch_discriminator_1d.1} parent=5 // pred_check_branch
      %210 = sbr.rel (%p207) target = $region40
    $region39: #{patch_discriminator_1d.1} parent=5 // pred_region
      %s211 = ssub.s32 %s11, 1
      %p212 = scmp.lt.s32.totalorder %s20, 1
      %s213 = scalar_select %p212, %s20, 1
      %p214 = scmp.lt.s32.totalorder %s21, 0
      %s215 = scalar_select %p214, %s21, 0
      %s216 = smul.addr %s213, 4
      %s217 = sadd.s32 %s215, %s216
      %s218 = smul.addr %s217, 4
      %s219 = scalar_lea.vmem %s0, %s218
      %p220 = pneg %p51
      %p221 = pneg %p48
      %p222 = pneg %p72
      %p223 = pneg %p69
      %p224 = pneg %p93
      %p225 = pneg %p90
      %p226 = pneg %p114
      %p227 = pneg %p111
      %p228 = pneg %p135
      %p229 = pneg %p132
      %p230 = pneg %p163
      %p231 = pneg %p160
      %p232 = scmp.lt.s32.totalorder %s20, 1
      %s233 = scalar_select %p232, %s20, 1
      %p234 = scmp.lt.s32.totalorder %s21, 0
      %s235 = scalar_select %p234, %s21, 0
      %s236 = sadd.s32 %s235, %s233
      %s237 = smul.addr %s236, 4
      %s238 = scalar_lea.vmem %s5, %s237
      %p239 = scmp.lt.s32.totalorder %s20, 1
      %s240 = scalar_select %p239, %s20, 1
      %p241 = scmp.lt.s32.totalorder %s21, 0
      %s242 = scalar_select %p241, %s21, 0
      %s243 = smul.addr %s240, 4
      %s244 = sadd.s32 %s242, %s243
      %s245 = smul.addr %s244, 4
      %s246 = scalar_lea.vmem %s0, %s245
      %p247 = scmp.lt.s32.totalorder %s20, 1
      %s248 = scalar_select %p247, %s20, 1
      %p249 = scmp.lt.s32.totalorder %s21, 0
      %s250 = scalar_select %p249, %s21, 0
      %s251 = sadd.s32 %s250, %s248
      %s252 = smul.addr %s251, 4
      %s253 = scalar_lea.vmem %s5, %s252
      %v255 = vld [vmem:[%s246] sm:$0xf]
      %v256 = vpack.c.bf16 %v255, %v255
      %v257 = vld [vmem:[%s1] sm:$0xf]
      %s258 = scalar_lea.vmem %s246, 4
      %v259 = vld [vmem:[%s258] sm:$0xf]
      %v260 = vpack.c.bf16 %v259, %v259
      %s261 = scalar_lea.vmem %s1, 4
      %v262 = vld [vmem:[%s261] sm:$0xf]
      %vm263 = vcmask 64512
      %v265 = vsel %vm263, %v260, 0
      %vm267 = vcmask 1043456
      %v269 = vsel %vm267, %v262, 0
      %271 = vmatprep.subr.bf16.mxu0 0
      %272 = vmatpush1.bf16.msra.mxu0 %v269
      %273 = vmatprep.subr.bf16.mxu0 0
      %274 = vmatpush1.bf16.msra.mxu0 0
      %275 = vmatprep.subr.bf16.mxu0 0
      %276 = vmatpush1.bf16.msra.mxu0 0
      %277 = vmatprep.subr.bf16.mxu0 0
      %278 = vmatpush1.bf16.msra.mxu0 0
      %279 = vmatprep.subr.bf16.mxu0 0
      %280 = vmatpush1.bf16.msra.mxu0 0
      %281 = vmatprep.subr.bf16.mxu0 0
      %282 = vmatpush1.bf16.msra.mxu0 0
      %283 = vmatprep.subr.bf16.mxu0 0
      %284 = vmatpush1.bf16.msra.mxu0 0
      %285 = vmatprep.subr.bf16.mxu0 0
      %286 = vmatpush1.bf16.msra.mxu0 0
      %287 = vmatprep.subr.bf16.mxu0 0
      %288 = vmatpush1.bf16.msra.mxu0 0
      %289 = vmatprep.subr.bf16.mxu0 0
      %290 = vmatpush1.bf16.msra.mxu0 0
      %291 = vmatprep.subr.bf16.mxu0 0
      %292 = vmatpush1.bf16.msra.mxu0 0
      %293 = vmatprep.subr.bf16.mxu0 0
      %294 = vmatpush1.bf16.msra.mxu0 0
      %295 = vmatprep.subr.bf16.mxu0 0
      %296 = vmatpush1.bf16.msra.mxu0 0
      %297 = vmatprep.subr.bf16.mxu0 0
      %298 = vmatpush1.bf16.msra.mxu0 0
      %299 = vmatprep.subr.bf16.mxu0 0
      %300 = vmatpush1.bf16.msra.mxu0 0
      %301 = vmatprep.subr.bf16.mxu0 0
      %302 = vmatpush1.bf16.msra.mxu0 0
      %303 = vmatprep.mubr.bf16.mxu0 0
      %304 = vmatmul.mubr.bf16.gmra.mrb[0].mxu0 %v265
      %v305 = vpop.f32.mrb[0].mxu0
      %v306 = vadd.f32 0.0, %v305
      %v307 = vpop.f32.mrb[0].mxu0
      %v308 = vpop.f32.mrb[0].mxu0
      %v309 = vpop.f32.mrb[0].mxu0
      %310 = vdwg.mxu0
      %v312 = vsel %vm263, %v256, 0
      %v315 = vsel %vm267, %v257, 0
      %317 = vmatprep.subr.bf16.mxu0 0
      %318 = vmatpush1.bf16.msra.mxu0 %v315
      %319 = vmatprep.subr.bf16.mxu0 0
      %320 = vmatpush1.bf16.msra.mxu0 0
      %321 = vmatprep.subr.bf16.mxu0 0
      %322 = vmatpush1.bf16.msra.mxu0 0
      %323 = vmatprep.subr.bf16.mxu0 0
      %324 = vmatpush1.bf16.msra.mxu0 0
      %325 = vmatprep.subr.bf16.mxu0 0
      %326 = vmatpush1.bf16.msra.mxu0 0
      %327 = vmatprep.subr.bf16.mxu0 0
      %328 = vmatpush1.bf16.msra.mxu0 0
      %329 = vmatprep.subr.bf16.mxu0 0
      %330 = vmatpush1.bf16.msra.mxu0 0
      %331 = vmatprep.subr.bf16.mxu0 0
      %332 = vmatpush1.bf16.msra.mxu0 0
      %333 = vmatprep.subr.bf16.mxu0 0
      %334 = vmatpush1.bf16.msra.mxu0 0
      %335 = vmatprep.subr.bf16.mxu0 0
      %336 = vmatpush1.bf16.msra.mxu0 0
      %337 = vmatprep.subr.bf16.mxu0 0
      %338 = vmatpush1.bf16.msra.mxu0 0
      %339 = vmatprep.subr.bf16.mxu0 0
      %340 = vmatpush1.bf16.msra.mxu0 0
      %341 = vmatprep.subr.bf16.mxu0 0
      %342 = vmatpush1.bf16.msra.mxu0 0
      %343 = vmatprep.subr.bf16.mxu0 0
      %344 = vmatpush1.bf16.msra.mxu0 0
      %345 = vmatprep.subr.bf16.mxu0 0
      %346 = vmatpush1.bf16.msra.mxu0 0
      %347 = vmatprep.subr.bf16.mxu0 0
      %348 = vmatpush1.bf16.msra.mxu0 0
      %349 = vmatprep.mubr.bf16.mxu0 0
      %350 = vmatmul.mubr.bf16.gmra.mrb[0].mxu0 %v312
      %v351 = vpop.f32.mrb[0].mxu0
      %v352 = vadd.f32 %v306, %v351
      %v353 = vpop.f32.mrb[0].mxu0
      %v354 = vpop.f32.mrb[0].mxu0
      %v355 = vpop.f32.mrb[0].mxu0
      %356 = vdwg.mxu0
      %s357 = scalar_lea.vmem %s246, 8
      %v358 = vld [vmem:[%s357] sm:$0xf]
      %v359 = vpack.c.bf16 %v358, %v358
      %s360 = scalar_lea.vmem %s1, 8
      %v361 = vld [vmem:[%s360] sm:$0xf]
      %v363 = vsel %vm263, %v359, 0
      %v366 = vsel %vm267, %v361, 0
      %368 = vmatprep.subr.bf16.mxu0 0
      %369 = vmatpush1.bf16.msra.mxu0 %v366
      %370 = vmatprep.subr.bf16.mxu0 0
      %371 = vmatpush1.bf16.msra.mxu0 0
      %372 = vmatprep.subr.bf16.mxu0 0
      %373 = vmatpush1.bf16.msra.mxu0 0
      %374 = vmatprep.subr.bf16.mxu0 0
      %375 = vmatpush1.bf16.msra.mxu0 0
      %376 = vmatprep.subr.bf16.mxu0 0
      %377 = vmatpush1.bf16.msra.mxu0 0
      %378 = vmatprep.subr.bf16.mxu0 0
      %379 = vmatpush1.bf16.msra.mxu0 0
      %380 = vmatprep.subr.bf16.mxu0 0
      %381 = vmatpush1.bf16.msra.mxu0 0
      %382 = vmatprep.subr.bf16.mxu0 0
      %383 = vmatpush1.bf16.msra.mxu0 0
      %384 = vmatprep.subr.bf16.mxu0 0
      %385 = vmatpush1.bf16.msra.mxu0 0
      %386 = vmatprep.subr.bf16.mxu0 0
      %387 = vmatpush1.bf16.msra.mxu0 0
      %388 = vmatprep.subr.bf16.mxu0 0
      %389 = vmatpush1.bf16.msra.mxu0 0
      %390 = vmatprep.subr.bf16.mxu0 0
      %391 = vmatpush1.bf16.msra.mxu0 0
      %392 = vmatprep.subr.bf16.mxu0 0
      %393 = vmatpush1.bf16.msra.mxu0 0
      %394 = vmatprep.subr.bf16.mxu0 0
      %395 = vmatpush1.bf16.msra.mxu0 0
      %396 = vmatprep.subr.bf16.mxu0 0
      %397 = vmatpush1.bf16.msra.mxu0 0
      %398 = vmatprep.subr.bf16.mxu0 0
      %399 = vmatpush1.bf16.msra.mxu0 0
      %400 = vmatprep.mubr.bf16.mxu0 0
      %401 = vmatmul.mubr.bf16.gmra.mrb[0].mxu0 %v363
      %v402 = vpop.f32.mrb[0].mxu0
      %v403 = vadd.f32 0.0, %v402
      %v404 = vpop.f32.mrb[0].mxu0
      %v405 = vpop.f32.mrb[0].mxu0
      %v406 = vpop.f32.mrb[0].mxu0
      %407 = vdwg.mxu0
      %v408 = vadd.f32 %v352, %v403
      %s409 = scalar_lea.vmem %s246, 12
      %v410 = vld [vmem:[%s409] sm:$0xf]
      %v411 = vpack.c.bf16 %v410, %v410
      %s412 = scalar_lea.vmem %s1, 12
      %v413 = vld [vmem:[%s412] sm:$0xf]
      %v415 = vsel %vm263, %v411, 0
      %v418 = vsel %vm267, %v413, 0
      %420 = vmatprep.subr.bf16.mxu0 0
      %421 = vmatpush1.bf16.msra.mxu0 %v418
      %422 = vmatprep.subr.bf16.mxu0 0
      %423 = vmatpush1.bf16.msra.mxu0 0
      %424 = vmatprep.subr.bf16.mxu0 0
      %425 = vmatpush1.bf16.msra.mxu0 0
      %426 = vmatprep.subr.bf16.mxu0 0
      %427 = vmatpush1.bf16.msra.mxu0 0
      %428 = vmatprep.subr.bf16.mxu0 0
      %429 = vmatpush1.bf16.msra.mxu0 0
      %430 = vmatprep.subr.bf16.mxu0 0
      %431 = vmatpush1.bf16.msra.mxu0 0
      %432 = vmatprep.subr.bf16.mxu0 0
      %433 = vmatpush1.bf16.msra.mxu0 0
      %434 = vmatprep.subr.bf16.mxu0 0
      %435 = vmatpush1.bf16.msra.mxu0 0
      %436 = vmatprep.subr.bf16.mxu0 0
      %437 = vmatpush1.bf16.msra.mxu0 0
      %438 = vmatprep.subr.bf16.mxu0 0
      %439 = vmatpush1.bf16.msra.mxu0 0
      %440 = vmatprep.subr.bf16.mxu0 0
      %441 = vmatpush1.bf16.msra.mxu0 0
      %442 = vmatprep.subr.bf16.mxu0 0
      %443 = vmatpush1.bf16.msra.mxu0 0
      %444 = vmatprep.subr.bf16.mxu0 0
      %445 = vmatpush1.bf16.msra.mxu0 0
      %446 = vmatprep.subr.bf16.mxu0 0
      %447 = vmatpush1.bf16.msra.mxu0 0
      %448 = vmatprep.subr.bf16.mxu0 0
      %449 = vmatpush1.bf16.msra.mxu0 0
      %450 = vmatprep.subr.bf16.mxu0 0
      %451 = vmatpush1.bf16.msra.mxu0 0
      %452 = vmatprep.mubr.bf16.mxu0 0
      %453 = vmatmul.mubr.bf16.gmra.mrb[0].mxu0 %v415
      %v454 = vpop.f32.mrb[0].mxu0
      %v455 = vadd.f32 0.0, %v454
      %v456 = vpop.f32.mrb[0].mxu0
      %v457 = vpop.f32.mrb[0].mxu0
      %v458 = vpop.f32.mrb[0].mxu0
      %459 = vdwg.mxu0
      %v460 = vadd.f32 %v408, %v455
      %v461 = vld [vmem:[%s2] sm:$0x1]
      %v463 = vlaneseq
      %v464 = vshrl.u32 %v463, 7
      %v465 = vsub.s32 0, %v464
      %v466 = vrot.slane %v461, %v465
      %v468 = vadd.f32 %v460, %v466
      %v469 = vmul.f32 %v468, 0.5
      %v470 = vmul.f32 %v468, 0.70710677
      %v471 = verf.f32.pop %v470
      %v472 = vadd.f32 %v471, 1.0
      %v473 = vmul.f32 %v469, %v472
      %v474 = vpack.c.bf16 %v473, %v473
      %v475 = vld [vmem:[%s3] sm:$0xf]
      %v476 = vld [vmem:[%s3 + $0x4] sm:$0xf]
      %v477 = vld [vmem:[%s3 + $0x8] sm:$0xf]
      %v478 = vld [vmem:[%s3 + $0xc] sm:$0xf]
      %v479 = vld [vmem:[%s3 + $0x10] sm:$0xf]
      %v480 = vld [vmem:[%s3 + $0x14] sm:$0xf]
      %v481 = vld [vmem:[%s3 + $0x18] sm:$0xf]
      %v482 = vld [vmem:[%s3 + $0x1c] sm:$0xf]
      %v483 = vld [vmem:[%s3 + $0x20] sm:$0xf]
      %v484 = vld [vmem:[%s3 + $0x24] sm:$0xf]
      %v485 = vld [vmem:[%s3 + $0x28] sm:$0xf]
      %v486 = vld [vmem:[%s3 + $0x2c] sm:$0xf]
      %v487 = vld [vmem:[%s3 + $0x30] sm:$0xf]
      %v488 = vld [vmem:[%s3 + $0x34] sm:$0xf]
      %v489 = vld [vmem:[%s3 + $0x38] sm:$0xf]
      %v490 = vld [vmem:[%s3 + $0x3c] sm:$0xf]
      %v491 = vld [vmem:[%s4] sm:$0x1]
      %v493 = vlaneseq
      %v494 = vshrl.u32 %v493, 7
      %v495 = vsub.s32 0, %v494
      %v496 = vrot.slane %v491, %v495
      %v514 = vunpack.c.l.b16 %v475
      %v515 = vunpack.c.l.b16 %v476
      %v516 = vunpack.c.l.b16 %v477
      %v517 = vunpack.c.l.b16 %v478
      %v518 = vunpack.c.l.b16 %v479
      %v519 = vunpack.c.l.b16 %v480
      %v520 = vunpack.c.l.b16 %v481
      %v521 = vunpack.c.l.b16 %v482
      %v522 = vunpack.c.l.b16 %v483
      %v523 = vunpack.c.l.b16 %v484
      %v524 = vunpack.c.l.b16 %v485
      %v525 = vunpack.c.l.b16 %v486
      %v526 = vunpack.c.l.b16 %v487
      %v527 = vunpack.c.l.b16 %v488
      %v528 = vunpack.c.l.b16 %v489
      %v529 = vunpack.c.l.b16 %v490
      %v530 = vpack.c.b16 %v515, %v514
      %v531 = vpack.c.b16 %v517, %v516
      %v532 = vpack.c.b16 %v519, %v518
      %v533 = vpack.c.b16 %v521, %v520
      %v534 = vpack.c.b16 %v523, %v522
      %v535 = vpack.c.b16 %v525, %v524
      %v536 = vpack.c.b16 %v527, %v526
      %v537 = vpack.c.b16 %v529, %v528
      %546 = vmatprep.subr.bf16.mxu0 0
      %547 = vmatpush1.bf16.msra.mxu0 %v530
      %548 = vmatprep.subr.bf16.mxu0 0
      %549 = vmatpush1.bf16.msra.mxu0 %v531
      %550 = vmatprep.subr.bf16.mxu0 0
      %551 = vmatpush1.bf16.msra.mxu0 %v532
      %552 = vmatprep.subr.bf16.mxu0 0
      %553 = vmatpush1.bf16.msra.mxu0 %v533
      %554 = vmatprep.subr.bf16.mxu0 0
      %555 = vmatpush1.bf16.msra.mxu0 %v534
      %556 = vmatprep.subr.bf16.mxu0 0
      %557 = vmatpush1.bf16.msra.mxu0 %v535
      %558 = vmatprep.subr.bf16.mxu0 0
      %559 = vmatpush1.bf16.msra.mxu0 %v536
      %560 = vmatprep.subr.bf16.mxu0 0
      %561 = vmatpush1.bf16.msra.mxu0 %v537
      %562 = vmatprep.subr.bf16.mxu0 0
      %563 = vmatpush1.bf16.msra.mxu0 0
      %564 = vmatprep.subr.bf16.mxu0 0
      %565 = vmatpush1.bf16.msra.mxu0 0
      %566 = vmatprep.subr.bf16.mxu0 0
      %567 = vmatpush1.bf16.msra.mxu0 0
      %568 = vmatprep.subr.bf16.mxu0 0
      %569 = vmatpush1.bf16.msra.mxu0 0
      %570 = vmatprep.subr.bf16.mxu0 0
      %571 = vmatpush1.bf16.msra.mxu0 0
      %572 = vmatprep.subr.bf16.mxu0 0
      %573 = vmatpush1.bf16.msra.mxu0 0
      %574 = vmatprep.subr.bf16.mxu0 0
      %575 = vmatpush1.bf16.msra.mxu0 0
      %576 = vmatprep.subr.bf16.mxu0 0
      %577 = vmatpush1.bf16.msra.mxu0 0
      %578 = vmatprep.mubr.bf16.mxu0 0
      %579 = vmatmul.mubr.bf16.gmra.mrb[0].mxu0 %v474
      %v580 = vpop.f32.mrb[0].mxu0
      %v581 = vadd.f32 %v496, %v580
      %v582 = vpop.f32.mrb[0].mxu0
      %v583 = vpop.f32.mrb[0].mxu0
      %v584 = vpop.f32.mrb[0].mxu0
      %585 = vdwg.mxu0
      %v586 = vsub.f32 0.0, %v581
      %v587 = vmul.f32 %v586, 1.442695
      %v588 = vpow.pop %v587
      %v589 = vadd.f32 %v588, 1.0
      %v590 = vrcp.pop %v589
      %591 = vst [vmem:[%s253] sm:$0xf] %v590
      %p592 = scmp.lt.s32.totalorder %s20, 1
      %s593 = scalar_select %p592, %s20, 1
      %p594 = scmp.lt.s32.totalorder %s21, 0
      %s595 = scalar_select %p594, %s21, 0
      %s596 = sadd.s32 %s595, %s593
      %s597 = smul.addr %s596, 4
      %s598 = scalar_lea.vmem %s5, %s597
      // Predicated region
      $region41: #{patch_discriminator_1d.1} parent=39 // pred_check
        %p599 = pneg %p160
      $region42: #{patch_discriminator_1d.1} parent=39 // pred_check_branch
        %601 = sbr.rel (%p599) target = $region44
      $region43: #{patch_discriminator_1d.1} parent=39 // pred_region
        _
      $region44: #{patch_discriminator_1d.1} parent=39 // pred_fallthru
        _
    $region40: #{patch_discriminator_1d.1} parent=5 // pred_fallthru
      _
    %p602 = scmp.le.s32.totalorder 2, %s11
    // Predicated region
    $region45: #{patch_discriminator_1d.1} parent=5 // pred_check
      %p603 = pneg %p602
    $region46: #{patch_discriminator_1d.1} parent=5 // pred_check_branch
      %605 = sbr.rel (%p603) target = $region48
    $region47: #{patch_discriminator_1d.1} parent=5 // pred_region
      %s606 = ssub.s32 %s11, 2
      // Predicated region
      $region49: #{patch_discriminator_1d.1} parent=47 // pred_check
        %p607 = pneg %p166
      $region50: #{patch_discriminator_1d.1} parent=47 // pred_check_branch
        %609 = sbr.rel (%p607) target = $region52
      $region51: #{patch_discriminator_1d.1} parent=47 // pred_region
        %p610 = scmp.lt.s32.totalorder %s22, 1
        %s611 = scalar_select %p610, %s22, 1
        %p612 = scmp.lt.s32.totalorder %s23, 0
        %s613 = scalar_select %p612, %s23, 0
        %s614 = sadd.s32 %s613, %s611
        %s615 = smul.addr %s614, 4
        %s616 = scalar_lea.vmem %s5, %s615
      $region52: #{patch_discriminator_1d.1} parent=47 // pred_fallthru
        _
    $region48: #{patch_discriminator_1d.1} parent=5 // pred_fallthru
      _
  $region6: #{patch_discriminator_1d.1} parent=0 // loop_footer
    %s15 = sadd.s32 1, %s11
  $region7: #{patch_discriminator_1d.1} parent=0 // loop_footer_branch
    %10 = sbr.rel target = $region3
  $region8: #{patch_discriminator_1d.1} parent=0 // loop_exit
    _

</llo_original>
